<compile_context>
chip_gen: v7x
topology: tpu7x:2x2x1
jax: 0.10.0
libtpu: 0.0.40
codegen_flags: <defaults>
</compile_context>

<pallas_src>
import math
from functools import partial

import jax
import jax.numpy as jnp
from jax.experimental import pallas as pl
from jax.experimental.pallas import tpu as pltpu


# ----------------------------- configuration ------------------------------ #
B            = 2          # batch
IMG_H = IMG_W = 32        # input image spatial size
IMG_C        = 3          # input image channels
FEAT_H = FEAT_W = 16      # backbone feature spatial size (stride 2 stub)
FEAT_C       = 8          # backbone.num_channels[0]
HIDDEN       = 32         # MODEL.DECODER.HIDDEN_DIM
NUM_GROUPS   = 32         # GroupNorm(32, hidden_dim)
NUM_QUERIES  = 9          # MODEL.DECODER.NUM_QUERIES  (last query = relation token)
NUM_OBJ_CLS  = 4          # MODEL.NUM_OBJ_CLS  (focal loss => num_classes = NUM_OBJ_CLS)
DATA_DIM     = 2          # DATA.DIM -> bbox output dim = 2 * DATA_DIM = 4
NUM_DEC_LYRS = 3          # transformer.decoder.num_layers
NUM_CLASSES  = NUM_OBJ_CLS
BOX_DIM      = 2 * DATA_DIM
HEAD_PAD     = 128        # lane-dense slab width for the detection head

# The fused input_proj kernel implements the group-size-1 case of
# GroupNorm(32, hidden_dim) (mean/var per (batch, channel) over spatial).
# TODO(synk): generalize the reduction for HIDDEN != NUM_GROUPS.
assert HIDDEN == NUM_GROUPS, "kernel hard-codes GroupNorm group size 1"
assert HIDDEN + NUM_CLASSES <= HEAD_PAD and BOX_DIM <= HIDDEN


# ------------------------------ Pallas kernels ----------------------------- #
def input_proj_kernel(x_ref, w_ref, g_ref, beta_ref, o_ref, *, batch, hw):
    """Fused 1x1 conv (channel matmul) + GroupNorm(32, hidden), lane-major.

      x_ref : (Cin, B*HW) f32      w_ref : (Hd, Cin) bf16
      g/beta : (Hd, 1)   f32       o_ref : (Hd, B*HW) f32

    The conv bias is omitted: it is initialized to 0 AND a per-channel constant
    is cancelled exactly by the group-size-1 GroupNorm mean subtraction.
    """
    x = x_ref[...].astype(jnp.bfloat16)                     # (Cin, B*HW)
    y = jnp.dot(w_ref[...], x,
                preferred_element_type=jnp.float32)         # (Hd, B*HW) one MXU push
    gamma = g_ref[...]                                      # (Hd, 1)
    beta = beta_ref[...]                                    # (Hd, 1)
    inv_hw = 1.0 / hw
    for b in range(batch):                                  # static unroll (B=2)
        lo = b * hw                                         # lane-aligned (hw % 128 == 0)
        yb = y[:, lo:lo + hw]                               # (Hd, HW)
        # one-pass stats: sum and sum-of-squares (f32)
        s1 = jnp.sum(yb, axis=1, keepdims=True)             # (Hd, 1) lane reduce
        s2 = jnp.sum(yb * yb, axis=1, keepdims=True)        # (Hd, 1) lane reduce
        mean = s1 * inv_hw
        var = jnp.maximum(s2 * inv_hw - mean * mean, 0.0)
        scale = gamma * jax.lax.rsqrt(var + 1e-5)           # tiny (Hd,1) math
        shift = beta - mean * scale
        o_ref[:, lo:lo + hw] = yb * scale + shift           # fused scale/shift


def head_kernel(x_ref, wa_ref, ba_ref, w2_ref, b2_ref, w3_ref, b3_ref, o_ref):
    """class_embed Linear + bbox_embed MLP(3 layers, ReLU) + sigmoid, fused.

      x_ref  : (N, Hd) f32
      wa_ref : (Hd, PAD)  bf16 = [ bbox_w1 | cls_w | zeros ]  (fused first matmul)
      ba_ref : (1, PAD)   f32  = [ bbox_b1 | cls_b | zeros ]
      w2_ref : (PAD, PAD) bf16 = [[bb_w2, 0], [0, 0]]         (full-lane contraction)
      b2_ref : (1, PAD)   f32
      w3_ref : (PAD, PAD) bf16 = [[bb_w3, 0], [0, 0]]
      b3_ref : (1, PAD)   f32
      o_ref  : (N, PAD)   f32 lane-dense slab:
                 cols [0, BOX_DIM)            -> sigmoid(bbox)
                 cols [Hd, Hd + NUM_CLASSES)  -> class logits
                 other columns                -> don't-care padding
    """
    n, hd = x_ref.shape
    padw = wa_ref.shape[1]
    x = x_ref[...].astype(jnp.bfloat16)
    # fused: bbox layer-1 and class_embed share the same LHS (one MXU push)
    y = jnp.dot(x, wa_ref[...], preferred_element_type=jnp.float32) + ba_ref[...]
    # full-width ReLU; padded/class lanes feed zero rows of w2 -> no effect
    h = jnp.maximum(y, 0.0).astype(jnp.bfloat16)
    h = jnp.maximum(
        jnp.dot(h, w2_ref[...], preferred_element_type=jnp.float32) + b2_ref[...],
        0.0).astype(jnp.bfloat16)
    box_full = jax.nn.sigmoid(
        jnp.dot(h, w3_ref[...], preferred_element_type=jnp.float32) + b3_ref[...])
    # Merge into one full-width slab: cols < Hd from bbox branch (boxes in
    # [0, BOX_DIM)), cols >= Hd from the fused first matmul (class logits in
    # [Hd, Hd + NUM_CLASSES)).  Single unmasked full-width store.
    lane = jax.lax.broadcasted_iota(jnp.int32, (n, padw), 1)
    o_ref[...] = jnp.where(lane < hd, box_full, y)


# ------------------------------ Pallas wrappers ---------------------------- #
_VMEM_SPEC = pl.BlockSpec(memory_space=pltpu.MemorySpace.VMEM)


def input_proj_groupnorm(x, w, gamma, beta, *, batch):
    """x: (Cin, B*HW) -> (Hd, B*HW).  Single grid-less step, whole batch."""
    cin, bhw = x.shape
    hd = w.shape[0]
    hw = bhw // batch
    flops = 2 * hd * cin * bhw + 8 * hd * bhw
    bytes_accessed = (x.size * x.dtype.itemsize + w.size * w.dtype.itemsize
                      + gamma.size * 4 + beta.size * 4 + hd * bhw * 4)
    return pl.pallas_call(
        partial(input_proj_kernel, batch=batch, hw=hw),
        out_shape=jax.ShapeDtypeStruct((hd, bhw), jnp.float32),
        in_specs=[_VMEM_SPEC] * 4,
        out_specs=_VMEM_SPEC,
        cost_estimate=pl.CostEstimate(flops=flops,
                                      transcendentals=hd * batch,
                                      bytes_accessed=bytes_accessed),
    )(x, w, gamma, beta)


def detection_head(x, wa, ba, w2, b2, w3, b3, *, num_cls, box_dim):
    """x: (N, Hd) -> (cls_logits (N, num_cls), boxes (N, box_dim))."""
    n, hd = x.shape
    padw = wa.shape[1]
    npad = -(-n // 16) * 16                    # rows to a bf16 sublane-tile multiple
    if npad != n:
        x = jnp.pad(x, ((0, npad - n), (0, 0)))
    flops = 2 * npad * padw * (hd + 2 * padw) + 8 * npad * padw
    bytes_accessed = (x.size * x.dtype.itemsize
                      + wa.size * wa.dtype.itemsize + ba.size * 4
                      + w2.size * w2.dtype.itemsize + b2.size * 4
                      + w3.size * w3.dtype.itemsize + b3.size * 4
                      + npad * padw * 4)
    slab = pl.pallas_call(
        head_kernel,
        out_shape=jax.ShapeDtypeStruct((npad, padw), jnp.float32),
        in_specs=[_VMEM_SPEC] * 7,
        out_specs=_VMEM_SPEC,
        cost_estimate=pl.CostEstimate(flops=flops,
                                      transcendentals=npad * padw,
                                      bytes_accessed=bytes_accessed),
    )(x, wa, ba, w2, b2, w3, b3)
    cls = slab[:n, hd:hd + num_cls]
    box = slab[:n, :box_dim]
    return cls, box


# --------------------------- parameter construction ------------------------ #
def init_params(key):
    ks = jax.random.split(key, 16)
    p = {}

    # input_proj[0]: Conv2d(FEAT_C, HIDDEN, 1) with xavier_uniform (gain=1).
    # Bias init is 0 and a per-channel bias is cancelled by the group-size-1
    # GroupNorm mean subtraction -> omitted entirely (dead compute).
    bound = math.sqrt(6.0 / (FEAT_C + HIDDEN))
    proj_w = jax.random.uniform(ks[0], (HIDDEN, FEAT_C), jnp.float32, -bound, bound)
    p["proj_w"] = proj_w.astype(jnp.bfloat16)
    # GroupNorm(32, HIDDEN) affine params
    p["gn_gamma"] = jnp.ones((HIDDEN, 1), jnp.float32)
    p["gn_beta"] = jnp.zeros((HIDDEN, 1), jnp.float32)

    # class_embed: Linear(HIDDEN, NUM_CLASSES); focal-loss bias init
    prior_prob = 0.01
    bias_value = -math.log((1 - prior_prob) / prior_prob)
    cls_w = 0.02 * jax.random.normal(ks[1], (HIDDEN, NUM_CLASSES), jnp.float32)
    cls_b = jnp.full((1, NUM_CLASSES), bias_value, jnp.float32)

    # bbox_embed: MLP(HIDDEN, HIDDEN, 2*DATA_DIM, 3)
    bb_w1 = 0.02 * jax.random.normal(ks[2], (HIDDEN, HIDDEN), jnp.float32)
    bb_b1 = jnp.zeros((1, HIDDEN), jnp.float32)
    bb_w2 = 0.02 * jax.random.normal(ks[3], (HIDDEN, HIDDEN), jnp.float32)
    bb_b2 = jnp.zeros((1, HIDDEN), jnp.float32)
    # focal-loss init: last layer weight=0, bias=0, then bias[2:] = -2.0
    bb_w3 = jnp.zeros((HIDDEN, BOX_DIM), jnp.float32)
    bb_b3 = jnp.concatenate(
        [jnp.zeros((1, 2), jnp.float32),
         jnp.full((1, BOX_DIM - 2), -2.0, jnp.float32)], axis=-1)

    # --- fused / lane-padded head weights, packed ONCE at init (not per call) ---
    wa = jnp.zeros((HIDDEN, HEAD_PAD), jnp.float32)
    wa = wa.at[:, :HIDDEN].set(bb_w1)
    wa = wa.at[:, HIDDEN:HIDDEN + NUM_CLASSES].set(cls_w)
    p["head_wa"] = wa.astype(jnp.bfloat16)
    ba = jnp.zeros((1, HEAD_PAD), jnp.float32)
    ba = ba.at[:, :HIDDEN].set(bb_b1)
    ba = ba.at[:, HIDDEN:HIDDEN + NUM_CLASSES].set(cls_b)
    p["head_ba"] = ba
    w2 = jnp.zeros((HEAD_PAD, HEAD_PAD), jnp.float32).at[:HIDDEN, :HIDDEN].set(bb_w2)
    p["head_w2"] = w2.astype(jnp.bfloat16)
    p["head_b2"] = jnp.zeros((1, HEAD_PAD), jnp.float32).at[:, :HIDDEN].set(bb_b2)
    w3 = jnp.zeros((HEAD_PAD, HEAD_PAD), jnp.float32).at[:HIDDEN, :BOX_DIM].set(bb_w3)
    p["head_w3"] = w3.astype(jnp.bfloat16)
    p["head_b3"] = jnp.zeros((1, HEAD_PAD), jnp.float32).at[:, :BOX_DIM].set(bb_b3)

    # query_embed: Embedding(NUM_QUERIES, 2*HIDDEN)
    p["query_embed"] = jax.random.normal(ks[4], (NUM_QUERIES, 2 * HIDDEN),
                                         jnp.float32)

    # stub backbone channel-lift and stub decoder layers (external modules)
    p["bb_lift"] = 0.1 * jax.random.normal(ks[5], (IMG_C, FEAT_C), jnp.float32)
    p["dec"] = []
    for l in range(NUM_DEC_LYRS):
        wl = 0.1 * jax.random.normal(ks[6 + 2 * l], (HIDDEN, HIDDEN), jnp.float32)
        bl = 0.01 * jax.random.normal(ks[7 + 2 * l], (1, HIDDEN), jnp.float32)
        p["dec"].append((wl, bl))
    return p


# ---------------------------------- stubs ---------------------------------- #
def backbone_stub(samples_nchw, params):
    # TODO(synk): real backbone (ResNet/Swin + positional encoding) is external;
    # stub: 2x2 avg-pool + deterministic channel lift 3 -> FEAT_C, produced
    # directly in the lane-major (Cin, B*HW) layout input_proj consumes.
    x = samples_nchw.reshape(B, IMG_C, FEAT_H, 2, FEAT_W, 2).mean(axis=(3, 5))
    x = jnp.einsum("bchw,cd->dbhw", x, params["bb_lift"])      # (FEAT_C, B, fH, fW)
    feat = x.reshape(FEAT_C, B * FEAT_H * FEAT_W)               # (Cin, B*HW)
    mask = jnp.zeros((B, FEAT_H, FEAT_W), jnp.bool_)
    return feat, mask


def transformer_stub(src_slab, query_embed, params):
    # TODO(synk): deformable transformer is external; stub produces hs of shape
    # (num_dec_layers, B, NUM_QUERIES, HIDDEN) plus dummy references / attn map.
    # src_slab: (Hd, B*HW) lane-major output of input_proj.
    mem = src_slab.reshape(HIDDEN, B, FEAT_H * FEAT_W).mean(axis=2).T   # (B, Hd)
    q = query_embed[:, :HIDDEN]                                # (NQ, Hd)
    x = q[None, :, :] + mem[:, None, :]                        # (B, NQ, Hd)
    hs = []
    for wl, bl in params["dec"]:
        x = jnp.tanh(x @ wl + bl)
        hs.append(x)
    hs = jnp.stack(hs)                                         # (L, B, NQ, Hd)
    init_reference = jax.nn.sigmoid(query_embed[None, :, HIDDEN:HIDDEN + 2])
    init_reference = jnp.broadcast_to(init_reference, (B, NUM_QUERIES, 2))
    inter_references = jnp.broadcast_to(init_reference[None],
                                        (NUM_DEC_LYRS, B, NUM_QUERIES, 2))
    attn_map = jax.nn.softmax(
        jnp.einsum("bqd,bkd->bqk", x, x) / math.sqrt(HIDDEN), axis=-1)
    return hs, init_reference, inter_references, attn_map, None, None


# ----------------------------- RelationFormer fwd -------------------------- #
@jax.jit
def relationformer_forward(samples_nchw, params):
    # backbone + input_proj (Conv 1x1 + GroupNorm fused Pallas kernel)
    feat, mask = backbone_stub(samples_nchw, params)
    src_slab = input_proj_groupnorm(feat, params["proj_w"],
                                    params["gn_gamma"], params["gn_beta"],
                                    batch=B)                     # (Hd, B*HW)

    # transformer (external, stubbed)
    hs, init_ref, inter_refs, attn_map, enc_cls, enc_coord = transformer_stub(
        src_slab, params["query_embed"], params)

    # object / relation token split  (two_stage=False, with_box_refine=False)
    object_token = hs[..., :-1, :]                # (L, B, NQ-1, Hd)
    L, Bq, Qo, Hd = object_token.shape
    flat = object_token.reshape(L * Bq * Qo, Hd)

    # class_embed + bbox_embed + sigmoid (fused Pallas kernel; weights were
    # packed / lane-padded once in init_params)
    cls_flat, box_flat = detection_head(
        flat, params["head_wa"], params["head_ba"],
        params["head_w2"], params["head_b2"],
        params["head_w3"], params["head_b3"],
        num_cls=NUM_CLASSES, box_dim=BOX_DIM)

    outputs_class = cls_flat.reshape(L, Bq, Qo, NUM_CLASSES)
    outputs_coord = box_flat.reshape(L, Bq, Qo, BOX_DIM)

    out = {"pred_logits": outputs_class, "pred_boxes": outputs_coord,
           "attn_map": attn_map}

    cls_emb = hs[..., :-1, :]                     # use_dropout = False
    rel_emb = hs[..., -1, :]
    # not (training and aux_loss)  -> return last-layer embeddings
    return (cls_emb[-1], rel_emb[-1]), out


# ----------------------------------- main ---------------------------------- #
if __name__ == "__main__":
    key = jax.random.PRNGKey(0)
    k_params, k_inp = jax.random.split(key)
    params = init_params(k_params)
    samples = jax.random.normal(k_inp, (B, IMG_C, IMG_H, IMG_W), jnp.float32)

    (cls_emb, rel_emb), out = relationformer_forward(samples, params)
    jax.block_until_ready((cls_emb, rel_emb, out["pred_logits"],
                           out["pred_boxes"], out["attn_map"]))

    assert cls_emb.shape == (B, NUM_QUERIES - 1, HIDDEN)
    assert rel_emb.shape == (B, HIDDEN)
    assert out["pred_logits"].shape == (NUM_DEC_LYRS, B, NUM_QUERIES - 1, NUM_CLASSES)
    assert out["pred_boxes"].shape == (NUM_DEC_LYRS, B, NUM_QUERIES - 1, BOX_DIM)
    print("KERNEL_OK")
</pallas_src>

<mosaic_0001>
module attributes {stable_mosaic.version = 11 : i64} {
  func.func @input_proj_kernel(%arg0: memref<8x512xf32, #tpu.memory_space<vmem>>, %arg1: memref<32x8xbf16, #tpu.memory_space<vmem>>, %arg2: memref<32x1xf32, #tpu.memory_space<vmem>>, %arg3: memref<32x1xf32, #tpu.memory_space<vmem>>, %arg4: memref<32x512xf32, #tpu.memory_space<vmem>>) attributes {dimension_semantics = [], scalar_prefetch = 0 : i64, scratch_operands = 0 : i64, tpu.core_type = #tpu.core_type<tc>} {
    %c0 = arith.constant 0 : index
    %c0_0 = arith.constant 0 : index
    %0 = vector.load %arg0[%c0, %c0_0] : memref<8x512xf32, #tpu.memory_space<vmem>>, vector<8x512xf32>
    %1 = arith.truncf %0 : vector<8x512xf32> to vector<8x512xbf16>
    %c0_1 = arith.constant 0 : index
    %c0_2 = arith.constant 0 : index
    %2 = vector.load %arg1[%c0_1, %c0_2] : memref<32x8xbf16, #tpu.memory_space<vmem>>, vector<32x8xbf16>
    %cst = arith.constant dense<0.000000e+00> : vector<32x512xf32>
    %3 = tpu.matmul %2, %1, %cst {dimension_numbers = #tpu.dot_dimension_numbers<[1], [0], [0], [1], [0, 0, 1, 1], [], []>} : vector<32x8xbf16>, vector<8x512xbf16>, vector<32x512xf32> -> vector<32x512xf32>
    %c0_3 = arith.constant 0 : index
    %c0_4 = arith.constant 0 : index
    %4 = vector.load %arg2[%c0_3, %c0_4] : memref<32x1xf32, #tpu.memory_space<vmem>>, vector<32x1xf32>
    %c0_5 = arith.constant 0 : index
    %c0_6 = arith.constant 0 : index
    %5 = vector.load %arg3[%c0_5, %c0_6] : memref<32x1xf32, #tpu.memory_space<vmem>>, vector<32x1xf32>
    %6 = vector.extract_strided_slice %3 {offsets = [0, 0], sizes = [32, 256], strides = [1, 1]} : vector<32x512xf32> to vector<32x256xf32>
    %cst_7 = arith.constant dense<0.000000e+00> : vector<32xf32>
    %7 = vector.multi_reduction <add>, %6, %cst_7 [1] : vector<32x256xf32> to vector<32xf32>
    %8 = vector.shape_cast %7 : vector<32xf32> to vector<32x1xf32>
    %9 = arith.mulf %6, %6 : vector<32x256xf32>
    %cst_8 = arith.constant dense<0.000000e+00> : vector<32xf32>
    %10 = vector.multi_reduction <add>, %9, %cst_8 [1] : vector<32x256xf32> to vector<32xf32>
    %11 = vector.shape_cast %10 : vector<32xf32> to vector<32x1xf32>
    %cst_9 = arith.constant 3.906250e-03 : f32
    %12 = vector.broadcast %cst_9 : f32 to vector<32x1xf32>
    %13 = arith.mulf %8, %12 : vector<32x1xf32>
    %cst_10 = arith.constant 3.906250e-03 : f32
    %14 = vector.broadcast %cst_10 : f32 to vector<32x1xf32>
    %15 = arith.mulf %11, %14 : vector<32x1xf32>
    %16 = arith.mulf %13, %13 : vector<32x1xf32>
    %17 = arith.subf %15, %16 : vector<32x1xf32>
    %cst_11 = arith.constant 0.000000e+00 : f32
    %18 = vector.broadcast %cst_11 : f32 to vector<32x1xf32>
    %19 = arith.maximumf %17, %18 : vector<32x1xf32>
    %cst_12 = arith.constant 9.99999974E-6 : f32
    %20 = vector.broadcast %cst_12 : f32 to vector<32x1xf32>
    %21 = arith.addf %19, %20 : vector<32x1xf32>
    %22 = math.rsqrt %21 : vector<32x1xf32>
    %23 = arith.mulf %4, %22 : vector<32x1xf32>
    %24 = arith.mulf %13, %23 : vector<32x1xf32>
    %25 = arith.subf %5, %24 : vector<32x1xf32>
    %26 = vector.broadcast %23 : vector<32x1xf32> to vector<32x256xf32>
    %27 = arith.mulf %6, %26 : vector<32x256xf32>
    %28 = vector.broadcast %25 : vector<32x1xf32> to vector<32x256xf32>
    %29 = arith.addf %27, %28 : vector<32x256xf32>
    %c0_13 = arith.constant 0 : index
    %c0_14 = arith.constant 0 : index
    %30 = vector.load %arg4[%c0_13, %c0_14] : memref<32x512xf32, #tpu.memory_space<vmem>>, vector<32x256xf32>
    tpu.vector_store %arg4[%c0_13, %c0_14], %29 {strides = array<i32>} : memref<32x512xf32, #tpu.memory_space<vmem>>, vector<32x256xf32>,
    %31 = vector.extract_strided_slice %3 {offsets = [0, 256], sizes = [32, 256], strides = [1, 1]} : vector<32x512xf32> to vector<32x256xf32>
    %cst_15 = arith.constant dense<0.000000e+00> : vector<32xf32>
    %32 = vector.multi_reduction <add>, %31, %cst_15 [1] : vector<32x256xf32> to vector<32xf32>
    %33 = vector.shape_cast %32 : vector<32xf32> to vector<32x1xf32>
    %34 = arith.mulf %31, %31 : vector<32x256xf32>
    %cst_16 = arith.constant dense<0.000000e+00> : vector<32xf32>
    %35 = vector.multi_reduction <add>, %34, %cst_16 [1] : vector<32x256xf32> to vector<32xf32>
    %36 = vector.shape_cast %35 : vector<32xf32> to vector<32x1xf32>
    %cst_17 = arith.constant 3.906250e-03 : f32
    %37 = vector.broadcast %cst_17 : f32 to vector<32x1xf32>
    %38 = arith.mulf %33, %37 : vector<32x1xf32>
    %cst_18 = arith.constant 3.906250e-03 : f32
    %39 = vector.broadcast %cst_18 : f32 to vector<32x1xf32>
    %40 = arith.mulf %36, %39 : vector<32x1xf32>
    %41 = arith.mulf %38, %38 : vector<32x1xf32>
    %42 = arith.subf %40, %41 : vector<32x1xf32>
    %cst_19 = arith.constant 0.000000e+00 : f32
    %43 = vector.broadcast %cst_19 : f32 to vector<32x1xf32>
    %44 = arith.maximumf %42, %43 : vector<32x1xf32>
    %cst_20 = arith.constant 9.99999974E-6 : f32
    %45 = vector.broadcast %cst_20 : f32 to vector<32x1xf32>
    %46 = arith.addf %44, %45 : vector<32x1xf32>
    %47 = math.rsqrt %46 : vector<32x1xf32>
    %48 = arith.mulf %4, %47 : vector<32x1xf32>
    %49 = arith.mulf %38, %48 : vector<32x1xf32>
    %50 = arith.subf %5, %49 : vector<32x1xf32>
    %51 = vector.broadcast %48 : vector<32x1xf32> to vector<32x256xf32>
    %52 = arith.mulf %31, %51 : vector<32x256xf32>
    %53 = vector.broadcast %50 : vector<32x1xf32> to vector<32x256xf32>
    %54 = arith.addf %52, %53 : vector<32x256xf32>
    %c0_21 = arith.constant 0 : index
    %c256 = arith.constant 256 : index
    %55 = vector.load %arg4[%c0_21, %c256] : memref<32x512xf32, #tpu.memory_space<vmem>>, vector<32x256xf32>
    tpu.vector_store %arg4[%c0_21, %c256], %54 {strides = array<i32>} : memref<32x512xf32, #tpu.memory_space<vmem>>, vector<32x256xf32>,
    return
  }
}

module attributes {stable_mosaic.version = 11 : i64} {
  func.func @head_kernel(%arg0: memref<48x32xf32, #tpu.memory_space<vmem>>, %arg1: memref<32x128xbf16, #tpu.memory_space<vmem>>, %arg2: memref<1x128xf32, #tpu.memory_space<vmem>>, %arg3: memref<128x128xbf16, #tpu.memory_space<vmem>>, %arg4: memref<1x128xf32, #tpu.memory_space<vmem>>, %arg5: memref<128x128xbf16, #tpu.memory_space<vmem>>, %arg6: memref<1x128xf32, #tpu.memory_space<vmem>>, %arg7: memref<48x128xf32, #tpu.memory_space<vmem>>) attributes {dimension_semantics = [], scalar_prefetch = 0 : i64, scratch_operands = 0 : i64, tpu.core_type = #tpu.core_type<tc>} {
    %c0 = arith.constant 0 : index
    %c0_0 = arith.constant 0 : index
    %0 = vector.load %arg0[%c0, %c0_0] : memref<48x32xf32, #tpu.memory_space<vmem>>, vector<48x32xf32>
    %1 = arith.truncf %0 : vector<48x32xf32> to vector<48x32xbf16>
    %c0_1 = arith.constant 0 : index
    %c0_2 = arith.constant 0 : index
    %2 = vector.load %arg1[%c0_1, %c0_2] : memref<32x128xbf16, #tpu.memory_space<vmem>>, vector<32x128xbf16>
    %cst = arith.constant dense<0.000000e+00> : vector<48x128xf32>
    %3 = tpu.matmul %1, %2, %cst {dimension_numbers = #tpu.dot_dimension_numbers<[1], [0], [0], [1], [0, 0, 1, 1], [], []>} : vector<48x32xbf16>, vector<32x128xbf16>, vector<48x128xf32> -> vector<48x128xf32>
    %c0_3 = arith.constant 0 : index
    %c0_4 = arith.constant 0 : index
    %4 = vector.load %arg2[%c0_3, %c0_4] : memref<1x128xf32, #tpu.memory_space<vmem>>, vector<1x128xf32>
    %5 = vector.broadcast %4 : vector<1x128xf32> to vector<48x128xf32>
    %6 = arith.addf %3, %5 : vector<48x128xf32>
    %cst_5 = arith.constant 0.000000e+00 : f32
    %7 = vector.broadcast %cst_5 : f32 to vector<48x128xf32>
    %8 = arith.maximumf %6, %7 : vector<48x128xf32>
    %9 = arith.truncf %8 : vector<48x128xf32> to vector<48x128xbf16>
    %c0_6 = arith.constant 0 : index
    %c0_7 = arith.constant 0 : index
    %10 = vector.load %arg3[%c0_6, %c0_7] : memref<128x128xbf16, #tpu.memory_space<vmem>>, vector<128x128xbf16>
    %cst_8 = arith.constant dense<0.000000e+00> : vector<48x128xf32>
    %11 = tpu.matmul %9, %10, %cst_8 {dimension_numbers = #tpu.dot_dimension_numbers<[1], [0], [0], [1], [0, 0, 1, 1], [], []>} : vector<48x128xbf16>, vector<128x128xbf16>, vector<48x128xf32> -> vector<48x128xf32>
    %c0_9 = arith.constant 0 : index
    %c0_10 = arith.constant 0 : index
    %12 = vector.load %arg4[%c0_9, %c0_10] : memref<1x128xf32, #tpu.memory_space<vmem>>, vector<1x128xf32>
    %13 = vector.broadcast %12 : vector<1x128xf32> to vector<48x128xf32>
    %14 = arith.addf %11, %13 : vector<48x128xf32>
    %cst_11 = arith.constant 0.000000e+00 : f32
    %15 = vector.broadcast %cst_11 : f32 to vector<48x128xf32>
    %16 = arith.maximumf %14, %15 : vector<48x128xf32>
    %17 = arith.truncf %16 : vector<48x128xf32> to vector<48x128xbf16>
    %c0_12 = arith.constant 0 : index
    %c0_13 = arith.constant 0 : index
    %18 = vector.load %arg5[%c0_12, %c0_13] : memref<128x128xbf16, #tpu.memory_space<vmem>>, vector<128x128xbf16>
    %cst_14 = arith.constant dense<0.000000e+00> : vector<48x128xf32>
    %19 = tpu.matmul %17, %18, %cst_14 {dimension_numbers = #tpu.dot_dimension_numbers<[1], [0], [0], [1], [0, 0, 1, 1], [], []>} : vector<48x128xbf16>, vector<128x128xbf16>, vector<48x128xf32> -> vector<48x128xf32>
    %c0_15 = arith.constant 0 : index
    %c0_16 = arith.constant 0 : index
    %20 = vector.load %arg6[%c0_15, %c0_16] : memref<1x128xf32, #tpu.memory_space<vmem>>, vector<1x128xf32>
    %21 = vector.broadcast %20 : vector<1x128xf32> to vector<48x128xf32>
    %22 = arith.addf %19, %21 : vector<48x128xf32>
    %23 = arith.negf %22 : vector<48x128xf32>
    %24 = math.exp %23 : vector<48x128xf32>
    %cst_17 = arith.constant 1.000000e+00 : f32
    %25 = vector.broadcast %cst_17 : f32 to vector<48x128xf32>
    %26 = arith.addf %25, %24 : vector<48x128xf32>
    %27 = arith.divf %25, %26 : vector<48x128xf32>
    %28 = tpu.iota {dimensions = array<i32: 1>} : vector<48x128xi32>
    %c32_i32 = arith.constant 32 : i32
    %29 = vector.broadcast %c32_i32 : i32 to vector<48x128xi32>
    %30 = arith.cmpi slt, %28, %29 : vector<48x128xi32>
    %31 = arith.select %30, %27, %6 : vector<48x128xi1>, vector<48x128xf32>
    %c0_18 = arith.constant 0 : index
    %c0_19 = arith.constant 0 : index
    %32 = vector.load %arg7[%c0_18, %c0_19] : memref<48x128xf32, #tpu.memory_space<vmem>>, vector<48x128xf32>
    tpu.vector_store %arg7[%c0_18, %c0_19], %31 {strides = array<i32>} : memref<48x128xf32, #tpu.memory_space<vmem>>, vector<48x128xf32>,
    return
  }
}

</mosaic_0001>

<llo_original>
// kernel: relationformer_forward.2
$region0: #{relationformer_forward.2}
  #allocation0 [shape = 'u32[]', space=smem, size = 0x4, offset = 0x4, fixed_abs, tag = 'smem constant byte address 0x4 - core index']
  #allocation1 [shape = 'u32[144,128]{1,0:T(1,128)}', space=vmem, size = 0x12000, scoped, tag = 'internal scratch']
  %s0 = inlined_call_operand.vmem [shape: f32[8,512], index: 0, kind: input, shape index: {}]
  %s1 = inlined_call_operand.vmem [shape: bf16[32,8], index: 1, kind: input, shape index: {}]
  %s2 = inlined_call_operand.vmem [shape: f32[32,1], index: 2, kind: input, shape index: {}]
  %s3 = inlined_call_operand.vmem [shape: f32[32,1], index: 3, kind: input, shape index: {}]
  %s4 = inlined_call_operand.vmem [shape: f32[32,512], index: 4, kind: output, shape index: {}]
  %s5 = sld [smem:[#allocation0]]
  $region26: #{relationformer_forward.2} parent=0
    _
  %s7 = ssub.s32 1, %s5
  %s8 = scalar_select 0, %s7, %s5
  // Predicated region
  $region2: #{relationformer_forward.2} parent=0 // pred_check
    _
  $region3: #{relationformer_forward.2} parent=0 // pred_check_branch
    %10 = sbr.rel (0) target = $region5
  $region4: #{relationformer_forward.2} parent=0 // pred_region
    _
  $region5: #{relationformer_forward.2} parent=0 // pred_fallthru
    _
  // Predicated region
  $region6: #{relationformer_forward.2} parent=0 // pred_check
    _
  $region7: #{relationformer_forward.2} parent=0 // pred_check_branch
    %12 = sbr.rel (0) target = $region9
  $region8: #{relationformer_forward.2} parent=0 // pred_region
    _
  $region9: #{relationformer_forward.2} parent=0 // pred_fallthru
    _
  // Predicated region
  $region10: #{relationformer_forward.2} parent=0 // pred_check
    _
  $region11: #{relationformer_forward.2} parent=0 // pred_check_branch
    %14 = sbr.rel (0) target = $region13
  $region12: #{relationformer_forward.2} parent=0 // pred_region
    _
  $region13: #{relationformer_forward.2} parent=0 // pred_fallthru
    _
  // Predicated region
  $region14: #{relationformer_forward.2} parent=0 // pred_check
    _
  $region15: #{relationformer_forward.2} parent=0 // pred_check_branch
    %16 = sbr.rel (0) target = $region17
  $region16: #{relationformer_forward.2} parent=0 // pred_region
    _
  $region17: #{relationformer_forward.2} parent=0 // pred_fallthru
    _
  %v18 = vld [vmem:[%s0] sm:$0xff]
  %v19 = vld [vmem:[%s0 + $0x8] sm:$0xff]
  %v20 = vld [vmem:[%s0 + $0x10] sm:$0xff]
  %v21 = vld [vmem:[%s0 + $0x18] sm:$0xff]
  %v22 = vpack.c.bf16 %v18, %v18
  %v23 = vpack.c.bf16 %v19, %v19
  %v24 = vpack.c.bf16 %v20, %v20
  %v25 = vpack.c.bf16 %v21, %v21
  %v26 = vld [vmem:[%s1] sm:$0xf]
  %v27 = vld [vmem:[%s1 + $0x4] sm:$0xf]
  %v28 = vld [vmem:[%s1 + $0x8] sm:$0xf]
  %v29 = vld [vmem:[%s1 + $0xc] sm:$0xf]
  %v34 = vunpack.c.l.b16 %v26
  %v35 = vunpack.c.l.b16 %v27
  %v36 = vunpack.c.l.b16 %v28
  %v37 = vunpack.c.l.b16 %v29
  %v38 = vpack.c.b16 %v35, %v34
  %v39 = vpack.c.b16 %v37, %v36
  %vm40 = vcmask 64512
  %v42 = vsel %vm40, %v38, 0
  %v45 = vsel %vm40, %v39, 0
  %vm47 = vcmask 1043456
  %v49 = vsel %vm47, %v22, 0
  %v52 = vsel %vm47, %v23, 0
  %v55 = vsel %vm47, %v24, 0
  %v58 = vsel %vm47, %v25, 0
  %60 = vmatprep.subr.bf16.mxu0 %v52
  %61 = vmatpush1.bf16.msra.mxu0 %v49
  %62 = vmatprep.subr.bf16.mxu0 0
  %63 = vmatpush1.bf16.msra.mxu0 0
  %64 = vmatprep.subr.bf16.mxu0 0
  %65 = vmatpush1.bf16.msra.mxu0 0
  %66 = vmatprep.subr.bf16.mxu0 0
  %67 = vmatpush1.bf16.msra.mxu0 0
  %68 = vmatprep.subr.bf16.mxu0 0
  %69 = vmatpush1.bf16.msra.mxu0 0
  %70 = vmatprep.subr.bf16.mxu0 0
  %71 = vmatpush1.bf16.msra.mxu0 0
  %72 = vmatprep.subr.bf16.mxu0 0
  %73 = vmatpush1.bf16.msra.mxu0 0
  %74 = vmatprep.subr.bf16.mxu0 0
  %75 = vmatpush1.bf16.msra.mxu0 0
  %76 = vmatprep.subr.bf16.mxu0 0
  %77 = vmatpush1.bf16.msra.mxu0 0
  %78 = vmatprep.subr.bf16.mxu0 0
  %79 = vmatpush1.bf16.msra.mxu0 0
  %80 = vmatprep.subr.bf16.mxu0 0
  %81 = vmatpush1.bf16.msra.mxu0 0
  %82 = vmatprep.subr.bf16.mxu0 0
  %83 = vmatpush1.bf16.msra.mxu0 0
  %84 = vmatprep.subr.bf16.mxu0 0
  %85 = vmatpush1.bf16.msra.mxu0 0
  %86 = vmatprep.subr.bf16.mxu0 0
  %87 = vmatpush1.bf16.msra.mxu0 0
  %88 = vmatprep.subr.bf16.mxu0 0
  %89 = vmatpush1.bf16.msra.mxu0 0
  %90 = vmatprep.subr.bf16.mxu0 0
  %91 = vmatpush1.bf16.msra.mxu0 0
  %92 = vmatprep.mubr.bf16.mxu0 0
  %93 = vmatmul.mubr.bf16.gmra.mrb[0].mxu0 %v42
  %v94 = vpop.f32.mrb[0].mxu0
  %v95 = vadd.f32 0.0, %v94
  %v96 = vpop.f32.mrb[0].mxu0
  %v97 = vadd.f32 0.0, %v96
  %v98 = vpop.f32.mrb[0].mxu0
  %v99 = vadd.f32 0.0, %v98
  %v100 = vpop.f32.mrb[0].mxu0
  %v101 = vadd.f32 0.0, %v100
  %102 = vmatprep.mubr.bf16.mxu0 0
  %103 = vmatmul.mubr.bf16.gmra.mrb[0].mxu0 %v45
  %v104 = vpop.f32.mrb[0].mxu0
  %v105 = vadd.f32 0.0, %v104
  %v106 = vpop.f32.mrb[0].mxu0
  %v107 = vadd.f32 0.0, %v106
  %v108 = vpop.f32.mrb[0].mxu0
  %v109 = vadd.f32 0.0, %v108
  %v110 = vpop.f32.mrb[0].mxu0
  %v111 = vadd.f32 0.0, %v110
  %112 = vdwg.mxu0
  %113 = vmatprep.subr.bf16.mxu0 %v58
  %114 = vmatpush1.bf16.msra.mxu0 %v55
  %115 = vmatprep.subr.bf16.mxu0 0
  %116 = vmatpush1.bf16.msra.mxu0 0
  %117 = vmatprep.subr.bf16.mxu0 0
  %118 = vmatpush1.bf16.msra.mxu0 0
  %119 = vmatprep.subr.bf16.mxu0 0
  %120 = vmatpush1.bf16.msra.mxu0 0
  %121 = vmatprep.subr.bf16.mxu0 0
  %122 = vmatpush1.bf16.msra.mxu0 0
  %123 = vmatprep.subr.bf16.mxu0 0
  %124 = vmatpush1.bf16.msra.mxu0 0
  %125 = vmatprep.subr.bf16.mxu0 0
  %126 = vmatpush1.bf16.msra.mxu0 0
  %127 = vmatprep.subr.bf16.mxu0 0
  %128 = vmatpush1.bf16.msra.mxu0 0
  %129 = vmatprep.subr.bf16.mxu0 0
  %130 = vmatpush1.bf16.msra.mxu0 0
  %131 = vmatprep.subr.bf16.mxu0 0
  %132 = vmatpush1.bf16.msra.mxu0 0
  %133 = vmatprep.subr.bf16.mxu0 0
  %134 = vmatpush1.bf16.msra.mxu0 0
  %135 = vmatprep.subr.bf16.mxu0 0
  %136 = vmatpush1.bf16.msra.mxu0 0
  %137 = vmatprep.subr.bf16.mxu0 0
  %138 = vmatpush1.bf16.msra.mxu0 0
  %139 = vmatprep.subr.bf16.mxu0 0
  %140 = vmatpush1.bf16.msra.mxu0 0
  %141 = vmatprep.subr.bf16.mxu0 0
  %142 = vmatpush1.bf16.msra.mxu0 0
  %143 = vmatprep.subr.bf16.mxu0 0
  %144 = vmatpush1.bf16.msra.mxu0 0
  %145 = vmatprep.mubr.bf16.mxu0 0
  %146 = vmatmul.mubr.bf16.gmra.mrb[0].mxu0 %v42
  %v147 = vpop.f32.mrb[0].mxu0
  %v148 = vadd.f32 0.0, %v147
  %v149 = vpop.f32.mrb[0].mxu0
  %v150 = vadd.f32 0.0, %v149
  %v151 = vpop.f32.mrb[0].mxu0
  %v152 = vadd.f32 0.0, %v151
  %v153 = vpop.f32.mrb[0].mxu0
  %v154 = vadd.f32 0.0, %v153
  %155 = vmatprep.mubr.bf16.mxu0 0
  %156 = vmatmul.mubr.bf16.gmra.mrb[0].mxu0 %v45
  %v157 = vpop.f32.mrb[0].mxu0
  %v158 = vadd.f32 0.0, %v157
  %v159 = vpop.f32.mrb[0].mxu0
  %v160 = vadd.f32 0.0, %v159
  %v161 = vpop.f32.mrb[0].mxu0
  %v162 = vadd.f32 0.0, %v161
  %v163 = vpop.f32.mrb[0].mxu0
  %v164 = vadd.f32 0.0, %v163
  %165 = vdwg.mxu0
  %v166 = vld [vmem:[%s2] sm:$0xff]
  %v167 = vld [vmem:[%s2 + $0x8] sm:$0xff]
  %v168 = vld [vmem:[%s2 + $0x10] sm:$0xff]
  %v169 = vld [vmem:[%s2 + $0x18] sm:$0xff]
  %v170 = vld [vmem:[%s3] sm:$0xff]
  %v171 = vld [vmem:[%s3 + $0x8] sm:$0xff]
  %v172 = vld [vmem:[%s3 + $0x10] sm:$0xff]
  %v173 = vld [vmem:[%s3 + $0x18] sm:$0xff]
  %v174 = vadd.f32 %v95, %v97
  %175 = vadd.xlane.f32.xlu0 %v174
  %v176 = vpop.xlane.xlu0 %175
  %v177 = vadd.f32 %v99, %v101
  %178 = vadd.xlane.f32.xlu0 %v177
  %v179 = vpop.xlane.xlu0 %178
  %v180 = vadd.f32 %v105, %v107
  %181 = vadd.xlane.f32.xlu0 %v180
  %v182 = vpop.xlane.xlu0 %181
  %v183 = vadd.f32 %v109, %v111
  %184 = vadd.xlane.f32.xlu0 %v183
  %v185 = vpop.xlane.xlu0 %184
  %v186 = vmul.f32 %v95, %v95
  %v187 = vmul.f32 %v97, %v97
  %v188 = vmul.f32 %v99, %v99
  %v189 = vmul.f32 %v101, %v101
  %v190 = vmul.f32 %v105, %v105
  %v191 = vmul.f32 %v107, %v107
  %v192 = vmul.f32 %v109, %v109
  %v193 = vmul.f32 %v111, %v111
  %v194 = vadd.f32 %v186, %v187
  %195 = vadd.xlane.f32.xlu0 %v194
  %v196 = vpop.xlane.xlu0 %195
  %v197 = vadd.f32 %v188, %v189
  %198 = vadd.xlane.f32.xlu0 %v197
  %v199 = vpop.xlane.xlu0 %198
  %v200 = vadd.f32 %v190, %v191
  %201 = vadd.xlane.f32.xlu0 %v200
  %v202 = vpop.xlane.xlu0 %201
  %v203 = vadd.f32 %v192, %v193
  %204 = vadd.xlane.f32.xlu0 %v203
  %v205 = vpop.xlane.xlu0 %204
  %v206 = vmul.f32 %v176, 0.00390625
  %v207 = vmul.f32 %v179, 0.00390625
  %v208 = vmul.f32 %v182, 0.00390625
  %v209 = vmul.f32 %v185, 0.00390625
  %v210 = vmul.f32 %v196, 0.00390625
  %v211 = vmul.f32 %v199, 0.00390625
  %v212 = vmul.f32 %v202, 0.00390625
  %v213 = vmul.f32 %v205, 0.00390625
  %v214 = vmul.f32 %v206, %v206
  %v215 = vmul.f32 %v207, %v207
  %v216 = vmul.f32 %v208, %v208
  %v217 = vmul.f32 %v209, %v209
  %v218 = vsub.f32 %v210, %v214
  %v219 = vsub.f32 %v211, %v215
  %v220 = vsub.f32 %v212, %v216
  %v221 = vsub.f32 %v213, %v217
  %v222 = vmax.f32 %v218, 0.0
  %v223 = vmax.f32 %v219, 0.0
  %v224 = vmax.f32 %v220, 0.0
  %v225 = vmax.f32 %v221, 0.0
  %v226 = vadd.f32 %v222, 1e-05
  %v227 = vadd.f32 %v223, 1e-05
  %v228 = vadd.f32 %v224, 1e-05
  %v229 = vadd.f32 %v225, 1e-05
  %v230 = vrsqrt.pop %v226
  %v231 = vrsqrt.pop %v227
  %v232 = vrsqrt.pop %v228
  %v233 = vrsqrt.pop %v229
  %v234 = vmul.f32 %v166, %v230
  %v235 = vmul.f32 %v167, %v231
  %v236 = vmul.f32 %v168, %v232
  %v237 = vmul.f32 %v169, %v233
  %v238 = vmul.f32 %v206, %v234
  %v239 = vmul.f32 %v207, %v235
  %v240 = vmul.f32 %v208, %v236
  %v241 = vmul.f32 %v209, %v237
  %v242 = vsub.f32 %v170, %v238
  %v243 = vsub.f32 %v171, %v239
  %v244 = vsub.f32 %v172, %v240
  %v245 = vsub.f32 %v173, %v241
  %247 = vset.pattern.permute.xlu0 0
  %248 = vperm.xlu0 %247, %v234
  %v249 = vpop.permute.xlu0 %248
  %252 = vset.pattern.permute.xlu0 0
  %253 = vperm.xlu0 %252, %v235
  %v254 = vpop.permute.xlu0 %253
  %257 = vset.pattern.permute.xlu0 0
  %258 = vperm.xlu0 %257, %v236
  %v259 = vpop.permute.xlu0 %258
  %262 = vset.pattern.permute.xlu0 0
  %263 = vperm.xlu0 %262, %v237
  %v264 = vpop.permute.xlu0 %263
  %v266 = vmul.f32 %v95, %v249
  %v267 = vmul.f32 %v97, %v249
  %v268 = vmul.f32 %v99, %v254
  %v269 = vmul.f32 %v101, %v254
  %v270 = vmul.f32 %v105, %v259
  %v271 = vmul.f32 %v107, %v259
  %v272 = vmul.f32 %v109, %v264
  %v273 = vmul.f32 %v111, %v264
  %275 = vset.pattern.permute.xlu0 0
  %276 = vperm.xlu0 %275, %v242
  %v277 = vpop.permute.xlu0 %276
  %280 = vset.pattern.permute.xlu0 0
  %281 = vperm.xlu0 %280, %v243
  %v282 = vpop.permute.xlu0 %281
  %285 = vset.pattern.permute.xlu0 0
  %286 = vperm.xlu0 %285, %v244
  %v287 = vpop.permute.xlu0 %286
  %290 = vset.pattern.permute.xlu0 0
  %291 = vperm.xlu0 %290, %v245
  %v292 = vpop.permute.xlu0 %291
  %v294 = vadd.f32 %v266, %v277
  %v295 = vadd.f32 %v267, %v277
  %v296 = vadd.f32 %v268, %v282
  %v297 = vadd.f32 %v269, %v282
  %v298 = vadd.f32 %v270, %v287
  %v299 = vadd.f32 %v271, %v287
  %v300 = vadd.f32 %v272, %v292
  %v301 = vadd.f32 %v273, %v292
  %302 = vst [vmem:[%s4] sm:$0xff] %v294
  %303 = vst [vmem:[%s4 + $0x8] sm:$0xff] %v295
  %304 = vst [vmem:[%s4 + $0x20] sm:$0xff] %v296
  %305 = vst [vmem:[%s4 + $0x28] sm:$0xff] %v297
  %306 = vst [vmem:[%s4 + $0x40] sm:$0xff] %v298
  %307 = vst [vmem:[%s4 + $0x48] sm:$0xff] %v299
  %308 = vst [vmem:[%s4 + $0x60] sm:$0xff] %v300
  %309 = vst [vmem:[%s4 + $0x68] sm:$0xff] %v301
  %v310 = vadd.f32 %v148, %v150
  %311 = vadd.xlane.f32.xlu0 %v310
  %v312 = vpop.xlane.xlu0 %311
  %v313 = vadd.f32 %v152, %v154
  %314 = vadd.xlane.f32.xlu0 %v313
  %v315 = vpop.xlane.xlu0 %314
  %v316 = vadd.f32 %v158, %v160
  %317 = vadd.xlane.f32.xlu0 %v316
  %v318 = vpop.xlane.xlu0 %317
  %v319 = vadd.f32 %v162, %v164
  %320 = vadd.xlane.f32.xlu0 %v319
  %v321 = vpop.xlane.xlu0 %320
  %v322 = vmul.f32 %v148, %v148
  %v323 = vmul.f32 %v150, %v150
  %v324 = vmul.f32 %v152, %v152
  %v325 = vmul.f32 %v154, %v154
  %v326 = vmul.f32 %v158, %v158
  %v327 = vmul.f32 %v160, %v160
  %v328 = vmul.f32 %v162, %v162
  %v329 = vmul.f32 %v164, %v164
  %v330 = vadd.f32 %v322, %v323
  %331 = vadd.xlane.f32.xlu0 %v330
  %v332 = vpop.xlane.xlu0 %331
  %v333 = vadd.f32 %v324, %v325
  %334 = vadd.xlane.f32.xlu0 %v333
  %v335 = vpop.xlane.xlu0 %334
  %v336 = vadd.f32 %v326, %v327
  %337 = vadd.xlane.f32.xlu0 %v336
  %v338 = vpop.xlane.xlu0 %337
  %v339 = vadd.f32 %v328, %v329
  %340 = vadd.xlane.f32.xlu0 %v339
  %v341 = vpop.xlane.xlu0 %340
  %v342 = vmul.f32 %v312, 0.00390625
  %v343 = vmul.f32 %v315, 0.00390625
  %v344 = vmul.f32 %v318, 0.00390625
  %v345 = vmul.f32 %v321, 0.00390625
  %v346 = vmul.f32 %v332, 0.00390625
  %v347 = vmul.f32 %v335, 0.00390625
  %v348 = vmul.f32 %v338, 0.00390625
  %v349 = vmul.f32 %v341, 0.00390625
  %v350 = vmul.f32 %v342, %v342
  %v351 = vmul.f32 %v343, %v343
  %v352 = vmul.f32 %v344, %v344
  %v353 = vmul.f32 %v345, %v345
  %v354 = vsub.f32 %v346, %v350
  %v355 = vsub.f32 %v347, %v351
  %v356 = vsub.f32 %v348, %v352
  %v357 = vsub.f32 %v349, %v353
  %v358 = vmax.f32 %v354, 0.0
  %v359 = vmax.f32 %v355, 0.0
  %v360 = vmax.f32 %v356, 0.0
  %v361 = vmax.f32 %v357, 0.0
  %v362 = vadd.f32 %v358, 1e-05
  %v363 = vadd.f32 %v359, 1e-05
  %v364 = vadd.f32 %v360, 1e-05
  %v365 = vadd.f32 %v361, 1e-05
  %v366 = vrsqrt.pop %v362
  %v367 = vrsqrt.pop %v363
  %v368 = vrsqrt.pop %v364
  %v369 = vrsqrt.pop %v365
  %v370 = vmul.f32 %v166, %v366
  %v371 = vmul.f32 %v167, %v367
  %v372 = vmul.f32 %v168, %v368
  %v373 = vmul.f32 %v169, %v369
  %v374 = vmul.f32 %v342, %v370
  %v375 = vmul.f32 %v343, %v371
  %v376 = vmul.f32 %v344, %v372
  %v377 = vmul.f32 %v345, %v373
  %v378 = vsub.f32 %v170, %v374
  %v379 = vsub.f32 %v171, %v375
  %v380 = vsub.f32 %v172, %v376
  %v381 = vsub.f32 %v173, %v377
  %383 = vset.pattern.permute.xlu0 0
  %384 = vperm.xlu0 %383, %v370
  %v385 = vpop.permute.xlu0 %384
  %388 = vset.pattern.permute.xlu0 0
  %389 = vperm.xlu0 %388, %v371
  %v390 = vpop.permute.xlu0 %389
  %393 = vset.pattern.permute.xlu0 0
  %394 = vperm.xlu0 %393, %v372
  %v395 = vpop.permute.xlu0 %394
  %398 = vset.pattern.permute.xlu0 0
  %399 = vperm.xlu0 %398, %v373
  %v400 = vpop.permute.xlu0 %399
  %v402 = vmul.f32 %v148, %v385
  %v403 = vmul.f32 %v150, %v385
  %v404 = vmul.f32 %v152, %v390
  %v405 = vmul.f32 %v154, %v390
  %v406 = vmul.f32 %v158, %v395
  %v407 = vmul.f32 %v160, %v395
  %v408 = vmul.f32 %v162, %v400
  %v409 = vmul.f32 %v164, %v400
  %411 = vset.pattern.permute.xlu0 0
  %412 = vperm.xlu0 %411, %v378
  %v413 = vpop.permute.xlu0 %412
  %416 = vset.pattern.permute.xlu0 0
  %417 = vperm.xlu0 %416, %v379
  %v418 = vpop.permute.xlu0 %417
  %421 = vset.pattern.permute.xlu0 0
  %422 = vperm.xlu0 %421, %v380
  %v423 = vpop.permute.xlu0 %422
  %426 = vset.pattern.permute.xlu0 0
  %427 = vperm.xlu0 %426, %v381
  %v428 = vpop.permute.xlu0 %427
  %v430 = vadd.f32 %v402, %v413
  %v431 = vadd.f32 %v403, %v413
  %v432 = vadd.f32 %v404, %v418
  %v433 = vadd.f32 %v405, %v418
  %v434 = vadd.f32 %v406, %v423
  %v435 = vadd.f32 %v407, %v423
  %v436 = vadd.f32 %v408, %v428
  %v437 = vadd.f32 %v409, %v428
  %438 = vst [vmem:[%s4 + $0x10] sm:$0xff] %v430
  %439 = vst [vmem:[%s4 + $0x18] sm:$0xff] %v431
  %440 = vst [vmem:[%s4 + $0x30] sm:$0xff] %v432
  %441 = vst [vmem:[%s4 + $0x38] sm:$0xff] %v433
  %442 = vst [vmem:[%s4 + $0x50] sm:$0xff] %v434
  %443 = vst [vmem:[%s4 + $0x58] sm:$0xff] %v435
  %444 = vst [vmem:[%s4 + $0x70] sm:$0xff] %v436
  %445 = vst [vmem:[%s4 + $0x78] sm:$0xff] %v437
  // Predicated region
  $region18: #{relationformer_forward.2} parent=0 // pred_check
    _
  $region19: #{relationformer_forward.2} parent=0 // pred_check_branch
    %447 = sbr.rel (0) target = $region21
  $region20: #{relationformer_forward.2} parent=0 // pred_region
    _
  $region21: #{relationformer_forward.2} parent=0 // pred_fallthru
    _
  // Predicated region
  $region22: #{relationformer_forward.2} parent=0 // pred_check
    _
  $region23: #{relationformer_forward.2} parent=0 // pred_check_branch
    %449 = sbr.rel (0) target = $region25
  $region24: #{relationformer_forward.2} parent=0 // pred_region
    _
  $region25: #{relationformer_forward.2} parent=0 // pred_fallthru
    _

// kernel: relationformer_forward.3
$region0: #{relationformer_forward.3}
  #allocation0 [shape = 'u32[]', space=smem, size = 0x4, offset = 0x4, fixed_abs, tag = 'smem constant byte address 0x4 - core index']
  #allocation1 [shape = 'u32[144,128]{1,0:T(1,128)}', space=vmem, size = 0x12000, scoped, tag = 'internal scratch']
  %s0 = inlined_call_operand.vmem [shape: f32[48,32], index: 0, kind: input, shape index: {}]
  %s1 = inlined_call_operand.vmem [shape: bf16[32,128], index: 1, kind: input, shape index: {}]
  %s2 = inlined_call_operand.vmem [shape: f32[1,128], index: 2, kind: input, shape index: {}]
  %s3 = inlined_call_operand.vmem [shape: bf16[128,128], index: 3, kind: input, shape index: {}]
  %s4 = inlined_call_operand.vmem [shape: f32[1,128], index: 4, kind: input, shape index: {}]
  %s5 = inlined_call_operand.vmem [shape: bf16[128,128], index: 5, kind: input, shape index: {}]
  %s6 = inlined_call_operand.vmem [shape: f32[1,128], index: 6, kind: input, shape index: {}]
  %s7 = inlined_call_operand.vmem [shape: f32[48,128], index: 7, kind: output, shape index: {}]
  %s8 = sld [smem:[#allocation0]]
  $region38: #{relationformer_forward.3} parent=0
    _
  %s10 = ssub.s32 1, %s8
  %s11 = scalar_select 0, %s10, %s8
  // Predicated region
  $region2: #{relationformer_forward.3} parent=0 // pred_check
    _
  $region3: #{relationformer_forward.3} parent=0 // pred_check_branch
    %13 = sbr.rel (0) target = $region5
  $region4: #{relationformer_forward.3} parent=0 // pred_region
    _
  $region5: #{relationformer_forward.3} parent=0 // pred_fallthru
    _
  // Predicated region
  $region6: #{relationformer_forward.3} parent=0 // pred_check
    _
  $region7: #{relationformer_forward.3} parent=0 // pred_check_branch
    %15 = sbr.rel (0) target = $region9
  $region8: #{relationformer_forward.3} parent=0 // pred_region
    _
  $region9: #{relationformer_forward.3} parent=0 // pred_fallthru
    _
  // Predicated region
  $region10: #{relationformer_forward.3} parent=0 // pred_check
    _
  $region11: #{relationformer_forward.3} parent=0 // pred_check_branch
    %17 = sbr.rel (0) target = $region13
  $region12: #{relationformer_forward.3} parent=0 // pred_region
    _
  $region13: #{relationformer_forward.3} parent=0 // pred_fallthru
    _
  // Predicated region
  $region14: #{relationformer_forward.3} parent=0 // pred_check
    _
  $region15: #{relationformer_forward.3} parent=0 // pred_check_branch
    %19 = sbr.rel (0) target = $region17
  $region16: #{relationformer_forward.3} parent=0 // pred_region
    _
  $region17: #{relationformer_forward.3} parent=0 // pred_fallthru
    _
  // Predicated region
  $region18: #{relationformer_forward.3} parent=0 // pred_check
    _
  $region19: #{relationformer_forward.3} parent=0 // pred_check_branch
    %21 = sbr.rel (0) target = $region21
  $region20: #{relationformer_forward.3} parent=0 // pred_region
    _
  $region21: #{relationformer_forward.3} parent=0 // pred_fallthru
    _
  // Predicated region
  $region22: #{relationformer_forward.3} parent=0 // pred_check
    _
  $region23: #{relationformer_forward.3} parent=0 // pred_check_branch
    %23 = sbr.rel (0) target = $region25
  $region24: #{relationformer_forward.3} parent=0 // pred_region
    _
  $region25: #{relationformer_forward.3} parent=0 // pred_fallthru
    _
  // Predicated region
  $region26: #{relationformer_forward.3} parent=0 // pred_check
    _
  $region27: #{relationformer_forward.3} parent=0 // pred_check_branch
    %25 = sbr.rel (0) target = $region29
  $region28: #{relationformer_forward.3} parent=0 // pred_region
    _
  $region29: #{relationformer_forward.3} parent=0 // pred_fallthru
    _
  %v27 = vld [vmem:[%s0] sm:$0xff]
  %v28 = vld [vmem:[%s0 + $0x8] sm:$0xff]
  %v29 = vld [vmem:[%s0 + $0x10] sm:$0xff]
  %v30 = vld [vmem:[%s0 + $0x18] sm:$0xff]
  %v31 = vld [vmem:[%s0 + $0x20] sm:$0xff]
  %v32 = vld [vmem:[%s0 + $0x28] sm:$0xff]
  %v33 = vpack.c.bf16 %v28, %v27
  %v34 = vpack.c.bf16 %v30, %v29
  %v35 = vpack.c.bf16 %v32, %v31
  %v36 = vld [vmem:[%s1] sm:$0xf]
  %v37 = vld [vmem:[%s1 + $0x4] sm:$0xf]
  %v38 = vld [vmem:[%s1 + $0x8] sm:$0xf]
  %v39 = vld [vmem:[%s1 + $0xc] sm:$0xf]
  %v40 = vld [vmem:[%s2] sm:$0x1]
  %v42 = vlaneseq
  %v43 = vshrl.u32 %v42, 7
  %v44 = vsub.s32 0, %v43
  %v45 = vrot.slane %v40, %v44
  %v51 = vunpack.c.l.b16 %v36
  %v52 = vunpack.c.l.b16 %v37
  %v53 = vunpack.c.l.b16 %v38
  %v54 = vunpack.c.l.b16 %v39
  %v55 = vpack.c.b16 %v52, %v51
  %v56 = vpack.c.b16 %v54, %v53
  %vm59 = vcmask 261120
  %v61 = vsel %vm59, %v33, 0
  %v64 = vsel %vm59, %v34, 0
  %v67 = vsel %vm59, %v35, 0
  %69 = vmatprep.subr.bf16.mxu0 0
  %70 = vmatpush1.bf16.msra.mxu0 %v55
  %71 = vmatprep.subr.bf16.mxu0 0
  %72 = vmatpush1.bf16.msra.mxu0 %v56
  %73 = vmatprep.subr.bf16.mxu0 0
  %74 = vmatpush1.bf16.msra.mxu0 0
  %75 = vmatprep.subr.bf16.mxu0 0
  %76 = vmatpush1.bf16.msra.mxu0 0
  %77 = vmatprep.subr.bf16.mxu0 0
  %78 = vmatpush1.bf16.msra.mxu0 0
  %79 = vmatprep.subr.bf16.mxu0 0
  %80 = vmatpush1.bf16.msra.mxu0 0
  %81 = vmatprep.subr.bf16.mxu0 0
  %82 = vmatpush1.bf16.msra.mxu0 0
  %83 = vmatprep.subr.bf16.mxu0 0
  %84 = vmatpush1.bf16.msra.mxu0 0
  %85 = vmatprep.subr.bf16.mxu0 0
  %86 = vmatpush1.bf16.msra.mxu0 0
  %87 = vmatprep.subr.bf16.mxu0 0
  %88 = vmatpush1.bf16.msra.mxu0 0
  %89 = vmatprep.subr.bf16.mxu0 0
  %90 = vmatpush1.bf16.msra.mxu0 0
  %91 = vmatprep.subr.bf16.mxu0 0
  %92 = vmatpush1.bf16.msra.mxu0 0
  %93 = vmatprep.subr.bf16.mxu0 0
  %94 = vmatpush1.bf16.msra.mxu0 0
  %95 = vmatprep.subr.bf16.mxu0 0
  %96 = vmatpush1.bf16.msra.mxu0 0
  %97 = vmatprep.subr.bf16.mxu0 0
  %98 = vmatpush1.bf16.msra.mxu0 0
  %99 = vmatprep.subr.bf16.mxu0 0
  %100 = vmatpush1.bf16.msra.mxu0 0
  %101 = vmatprep.mubr.bf16.mxu0 0
  %102 = vmatmul.mubr.bf16.gmra.mrb[0].mxu0 %v61
  %v103 = vpop.f32.mrb[0].mxu0
  %v104 = vadd.f32 %v45, %v103
  %v105 = vpop.f32.mrb[0].mxu0
  %v106 = vpop.f32.mrb[0].mxu0
  %v107 = vadd.f32 %v45, %v106
  %v108 = vpop.f32.mrb[0].mxu0
  %109 = vmatprep.mubr.bf16.mxu0 0
  %110 = vmatmul.mubr.bf16.gmra.mrb[0].mxu0 %v64
  %v111 = vpop.f32.mrb[0].mxu0
  %v112 = vadd.f32 %v45, %v111
  %v113 = vpop.f32.mrb[0].mxu0
  %v114 = vpop.f32.mrb[0].mxu0
  %v115 = vadd.f32 %v45, %v114
  %v116 = vpop.f32.mrb[0].mxu0
  %117 = vmatprep.mubr.bf16.mxu0 0
  %118 = vmatmul.mubr.bf16.gmra.mrb[0].mxu0 %v67
  %v119 = vpop.f32.mrb[0].mxu0
  %v120 = vadd.f32 %v45, %v119
  %v121 = vpop.f32.mrb[0].mxu0
  %v122 = vpop.f32.mrb[0].mxu0
  %v123 = vadd.f32 %v45, %v122
  %v124 = vpop.f32.mrb[0].mxu0
  %125 = vdwg.mxu0
  %v126 = vmax.f32 %v104, 0.0
  %v127 = vmax.f32 %v107, 0.0
  %v128 = vmax.f32 %v112, 0.0
  %v129 = vmax.f32 %v115, 0.0
  %v130 = vmax.f32 %v120, 0.0
  %v131 = vmax.f32 %v123, 0.0
  %v132 = vpack.c.bf16 %v127, %v126
  %v133 = vpack.c.bf16 %v129, %v128
  %v134 = vpack.c.bf16 %v131, %v130
  %v135 = vld [vmem:[%s3] sm:$0xf]
  %v136 = vld [vmem:[%s3 + $0x4] sm:$0xf]
  %v137 = vld [vmem:[%s3 + $0x8] sm:$0xf]
  %v138 = vld [vmem:[%s3 + $0xc] sm:$0xf]
  %v139 = vld [vmem:[%s3 + $0x10] sm:$0xf]
  %v140 = vld [vmem:[%s3 + $0x14] sm:$0xf]
  %v141 = vld [vmem:[%s3 + $0x18] sm:$0xf]
  %v142 = vld [vmem:[%s3 + $0x1c] sm:$0xf]
  %v143 = vld [vmem:[%s3 + $0x20] sm:$0xf]
  %v144 = vld [vmem:[%s3 + $0x24] sm:$0xf]
  %v145 = vld [vmem:[%s3 + $0x28] sm:$0xf]
  %v146 = vld [vmem:[%s3 + $0x2c] sm:$0xf]
  %v147 = vld [vmem:[%s3 + $0x30] sm:$0xf]
  %v148 = vld [vmem:[%s3 + $0x34] sm:$0xf]
  %v149 = vld [vmem:[%s3 + $0x38] sm:$0xf]
  %v150 = vld [vmem:[%s3 + $0x3c] sm:$0xf]
  %v151 = vld [vmem:[%s4] sm:$0x1]
  %v153 = vlaneseq
  %v154 = vshrl.u32 %v153, 7
  %v155 = vsub.s32 0, %v154
  %v156 = vrot.slane %v151, %v155
  %v174 = vunpack.c.l.b16 %v135
  %v175 = vunpack.c.l.b16 %v136
  %v176 = vunpack.c.l.b16 %v137
  %v177 = vunpack.c.l.b16 %v138
  %v178 = vunpack.c.l.b16 %v139
  %v179 = vunpack.c.l.b16 %v140
  %v180 = vunpack.c.l.b16 %v141
  %v181 = vunpack.c.l.b16 %v142
  %v182 = vunpack.c.l.b16 %v143
  %v183 = vunpack.c.l.b16 %v144
  %v184 = vunpack.c.l.b16 %v145
  %v185 = vunpack.c.l.b16 %v146
  %v186 = vunpack.c.l.b16 %v147
  %v187 = vunpack.c.l.b16 %v148
  %v188 = vunpack.c.l.b16 %v149
  %v189 = vunpack.c.l.b16 %v150
  %v190 = vpack.c.b16 %v175, %v174
  %v191 = vpack.c.b16 %v177, %v176
  %v192 = vpack.c.b16 %v179, %v178
  %v193 = vpack.c.b16 %v181, %v180
  %v194 = vpack.c.b16 %v183, %v182
  %v195 = vpack.c.b16 %v185, %v184
  %v196 = vpack.c.b16 %v187, %v186
  %v197 = vpack.c.b16 %v189, %v188
  %206 = vmatprep.subr.bf16.mxu0 0
  %207 = vmatpush1.bf16.msra.mxu0 %v190
  %208 = vmatprep.subr.bf16.mxu0 0
  %209 = vmatpush1.bf16.msra.mxu0 %v191
  %210 = vmatprep.subr.bf16.mxu0 0
  %211 = vmatpush1.bf16.msra.mxu0 %v192
  %212 = vmatprep.subr.bf16.mxu0 0
  %213 = vmatpush1.bf16.msra.mxu0 %v193
  %214 = vmatprep.subr.bf16.mxu0 0
  %215 = vmatpush1.bf16.msra.mxu0 %v194
  %216 = vmatprep.subr.bf16.mxu0 0
  %217 = vmatpush1.bf16.msra.mxu0 %v195
  %218 = vmatprep.subr.bf16.mxu0 0
  %219 = vmatpush1.bf16.msra.mxu0 %v196
  %220 = vmatprep.subr.bf16.mxu0 0
  %221 = vmatpush1.bf16.msra.mxu0 %v197
  %222 = vmatprep.subr.bf16.mxu0 0
  %223 = vmatpush1.bf16.msra.mxu0 0
  %224 = vmatprep.subr.bf16.mxu0 0
  %225 = vmatpush1.bf16.msra.mxu0 0
  %226 = vmatprep.subr.bf16.mxu0 0
  %227 = vmatpush1.bf16.msra.mxu0 0
  %228 = vmatprep.subr.bf16.mxu0 0
  %229 = vmatpush1.bf16.msra.mxu0 0
  %230 = vmatprep.subr.bf16.mxu0 0
  %231 = vmatpush1.bf16.msra.mxu0 0
  %232 = vmatprep.subr.bf16.mxu0 0
  %233 = vmatpush1.bf16.msra.mxu0 0
  %234 = vmatprep.subr.bf16.mxu0 0
  %235 = vmatpush1.bf16.msra.mxu0 0
  %236 = vmatprep.subr.bf16.mxu0 0
  %237 = vmatpush1.bf16.msra.mxu0 0
  %238 = vmatprep.mubr.bf16.mxu0 0
  %239 = vmatmul.mubr.bf16.gmra.mrb[0].mxu0 %v132
  %v240 = vpop.f32.mrb[0].mxu0
  %v241 = vadd.f32 %v156, %v240
  %v242 = vpop.f32.mrb[0].mxu0
  %v243 = vpop.f32.mrb[0].mxu0
  %v244 = vadd.f32 %v156, %v243
  %v245 = vpop.f32.mrb[0].mxu0
  %246 = vmatprep.mubr.bf16.mxu0 0
  %247 = vmatmul.mubr.bf16.gmra.mrb[0].mxu0 %v133
  %v248 = vpop.f32.mrb[0].mxu0
  %v249 = vadd.f32 %v156, %v248
  %v250 = vpop.f32.mrb[0].mxu0
  %v251 = vpop.f32.mrb[0].mxu0
  %v252 = vadd.f32 %v156, %v251
  %v253 = vpop.f32.mrb[0].mxu0
  %254 = vmatprep.mubr.bf16.mxu0 0
  %255 = vmatmul.mubr.bf16.gmra.mrb[0].mxu0 %v134
  %v256 = vpop.f32.mrb[0].mxu0
  %v257 = vadd.f32 %v156, %v256
  %v258 = vpop.f32.mrb[0].mxu0
  %v259 = vpop.f32.mrb[0].mxu0
  %v260 = vadd.f32 %v156, %v259
  %v261 = vpop.f32.mrb[0].mxu0
  %262 = vdwg.mxu0
  %v263 = vmax.f32 %v241, 0.0
  %v264 = vmax.f32 %v244, 0.0
  %v265 = vmax.f32 %v249, 0.0
  %v266 = vmax.f32 %v252, 0.0
  %v267 = vmax.f32 %v257, 0.0
  %v268 = vmax.f32 %v260, 0.0
  %v269 = vpack.c.bf16 %v264, %v263
  %v270 = vpack.c.bf16 %v266, %v265
  %v271 = vpack.c.bf16 %v268, %v267
  %v272 = vld [vmem:[%s5] sm:$0xf]
  %v273 = vld [vmem:[%s5 + $0x4] sm:$0xf]
  %v274 = vld [vmem:[%s5 + $0x8] sm:$0xf]
  %v275 = vld [vmem:[%s5 + $0xc] sm:$0xf]
  %v276 = vld [vmem:[%s5 + $0x10] sm:$0xf]
  %v277 = vld [vmem:[%s5 + $0x14] sm:$0xf]
  %v278 = vld [vmem:[%s5 + $0x18] sm:$0xf]
  %v279 = vld [vmem:[%s5 + $0x1c] sm:$0xf]
  %v280 = vld [vmem:[%s5 + $0x20] sm:$0xf]
  %v281 = vld [vmem:[%s5 + $0x24] sm:$0xf]
  %v282 = vld [vmem:[%s5 + $0x28] sm:$0xf]
  %v283 = vld [vmem:[%s5 + $0x2c] sm:$0xf]
  %v284 = vld [vmem:[%s5 + $0x30] sm:$0xf]
  %v285 = vld [vmem:[%s5 + $0x34] sm:$0xf]
  %v286 = vld [vmem:[%s5 + $0x38] sm:$0xf]
  %v287 = vld [vmem:[%s5 + $0x3c] sm:$0xf]
  %v288 = vld [vmem:[%s6] sm:$0x1]
  %v290 = vlaneseq
  %v291 = vshrl.u32 %v290, 7
  %v292 = vsub.s32 0, %v291
  %v293 = vrot.slane %v288, %v292
  %v311 = vunpack.c.l.b16 %v272
  %v312 = vunpack.c.l.b16 %v273
  %v313 = vunpack.c.l.b16 %v274
  %v314 = vunpack.c.l.b16 %v275
  %v315 = vunpack.c.l.b16 %v276
  %v316 = vunpack.c.l.b16 %v277
  %v317 = vunpack.c.l.b16 %v278
  %v318 = vunpack.c.l.b16 %v279
  %v319 = vunpack.c.l.b16 %v280
  %v320 = vunpack.c.l.b16 %v281
  %v321 = vunpack.c.l.b16 %v282
  %v322 = vunpack.c.l.b16 %v283
  %v323 = vunpack.c.l.b16 %v284
  %v324 = vunpack.c.l.b16 %v285
  %v325 = vunpack.c.l.b16 %v286
  %v326 = vunpack.c.l.b16 %v287
  %v327 = vpack.c.b16 %v312, %v311
  %v328 = vpack.c.b16 %v314, %v313
  %v329 = vpack.c.b16 %v316, %v315
  %v330 = vpack.c.b16 %v318, %v317
  %v331 = vpack.c.b16 %v320, %v319
  %v332 = vpack.c.b16 %v322, %v321
  %v333 = vpack.c.b16 %v324, %v323
  %v334 = vpack.c.b16 %v326, %v325
  %343 = vmatprep.subr.bf16.mxu0 0
  %344 = vmatpush1.bf16.msra.mxu0 %v327
  %345 = vmatprep.subr.bf16.mxu0 0
  %346 = vmatpush1.bf16.msra.mxu0 %v328
  %347 = vmatprep.subr.bf16.mxu0 0
  %348 = vmatpush1.bf16.msra.mxu0 %v329
  %349 = vmatprep.subr.bf16.mxu0 0
  %350 = vmatpush1.bf16.msra.mxu0 %v330
  %351 = vmatprep.subr.bf16.mxu0 0
  %352 = vmatpush1.bf16.msra.mxu0 %v331
  %353 = vmatprep.subr.bf16.mxu0 0
  %354 = vmatpush1.bf16.msra.mxu0 %v332
  %355 = vmatprep.subr.bf16.mxu0 0
  %356 = vmatpush1.bf16.msra.mxu0 %v333
  %357 = vmatprep.subr.bf16.mxu0 0
  %358 = vmatpush1.bf16.msra.mxu0 %v334
  %359 = vmatprep.subr.bf16.mxu0 0
  %360 = vmatpush1.bf16.msra.mxu0 0
  %361 = vmatprep.subr.bf16.mxu0 0
  %362 = vmatpush1.bf16.msra.mxu0 0
  %363 = vmatprep.subr.bf16.mxu0 0
  %364 = vmatpush1.bf16.msra.mxu0 0
  %365 = vmatprep.subr.bf16.mxu0 0
  %366 = vmatpush1.bf16.msra.mxu0 0
  %367 = vmatprep.subr.bf16.mxu0 0
  %368 = vmatpush1.bf16.msra.mxu0 0
  %369 = vmatprep.subr.bf16.mxu0 0
  %370 = vmatpush1.bf16.msra.mxu0 0
  %371 = vmatprep.subr.bf16.mxu0 0
  %372 = vmatpush1.bf16.msra.mxu0 0
  %373 = vmatprep.subr.bf16.mxu0 0
  %374 = vmatpush1.bf16.msra.mxu0 0
  %375 = vmatprep.mubr.bf16.mxu0 0
  %376 = vmatmul.mubr.bf16.gmra.mrb[0].mxu0 %v269
  %v377 = vpop.f32.mrb[0].mxu0
  %v378 = vadd.f32 %v293, %v377
  %v379 = vpop.f32.mrb[0].mxu0
  %v380 = vpop.f32.mrb[0].mxu0
  %v381 = vadd.f32 %v293, %v380
  %v382 = vpop.f32.mrb[0].mxu0
  %383 = vmatprep.mubr.bf16.mxu0 0
  %384 = vmatmul.mubr.bf16.gmra.mrb[0].mxu0 %v270
  %v385 = vpop.f32.mrb[0].mxu0
  %v386 = vadd.f32 %v293, %v385
  %v387 = vpop.f32.mrb[0].mxu0
  %v388 = vpop.f32.mrb[0].mxu0
  %v389 = vadd.f32 %v293, %v388
  %v390 = vpop.f32.mrb[0].mxu0
  %391 = vmatprep.mubr.bf16.mxu0 0
  %392 = vmatmul.mubr.bf16.gmra.mrb[0].mxu0 %v271
  %v393 = vpop.f32.mrb[0].mxu0
  %v394 = vadd.f32 %v293, %v393
  %v395 = vpop.f32.mrb[0].mxu0
  %v396 = vpop.f32.mrb[0].mxu0
  %v397 = vadd.f32 %v293, %v396
  %v398 = vpop.f32.mrb[0].mxu0
  %399 = vdwg.mxu0
  %v400 = vxor.u32 %v378, 2147483648
  %v401 = vxor.u32 %v381, 2147483648
  %v402 = vxor.u32 %v386, 2147483648
  %v403 = vxor.u32 %v389, 2147483648
  %v404 = vxor.u32 %v394, 2147483648
  %v405 = vxor.u32 %v397, 2147483648
  %v406 = vmul.f32 %v400, 1.442695
  %v407 = vpow.pop %v406
  %v408 = vmul.f32 %v401, 1.442695
  %v409 = vpow.pop %v408
  %v410 = vmul.f32 %v402, 1.442695
  %v411 = vpow.pop %v410
  %v412 = vmul.f32 %v403, 1.442695
  %v413 = vpow.pop %v412
  %v414 = vmul.f32 %v404, 1.442695
  %v415 = vpow.pop %v414
  %v416 = vmul.f32 %v405, 1.442695
  %v417 = vpow.pop %v416
  %v418 = vadd.f32 %v407, 1.0
  %v419 = vadd.f32 %v409, 1.0
  %v420 = vadd.f32 %v411, 1.0
  %v421 = vadd.f32 %v413, 1.0
  %v422 = vadd.f32 %v415, 1.0
  %v423 = vadd.f32 %v417, 1.0
  %v424 = vrcp.pop %v418
  %v425 = vmul.f32 1.0, %v424
  %v426 = vrcp.pop %v419
  %v427 = vmul.f32 1.0, %v426
  %v428 = vrcp.pop %v420
  %v429 = vmul.f32 1.0, %v428
  %v430 = vrcp.pop %v421
  %v431 = vmul.f32 1.0, %v430
  %v432 = vrcp.pop %v422
  %v433 = vmul.f32 1.0, %v432
  %v434 = vrcp.pop %v423
  %v435 = vmul.f32 1.0, %v434
  %v436 = vlaneseq
  %v437 = vand.u32 %v436, 127
  %vm438 = vcmp.lt.s32.totalorder %v437, 32
  %v439 = vsel %vm438, %v425, %v104
  %v440 = vsel %vm438, %v427, %v107
  %v441 = vsel %vm438, %v429, %v112
  %v442 = vsel %vm438, %v431, %v115
  %v443 = vsel %vm438, %v433, %v120
  %v444 = vsel %vm438, %v435, %v123
  %445 = vst [vmem:[%s7] sm:$0xff] %v439
  %446 = vst [vmem:[%s7 + $0x8] sm:$0xff] %v440
  %447 = vst [vmem:[%s7 + $0x10] sm:$0xff] %v441
  %448 = vst [vmem:[%s7 + $0x18] sm:$0xff] %v442
  %449 = vst [vmem:[%s7 + $0x20] sm:$0xff] %v443
  %450 = vst [vmem:[%s7 + $0x28] sm:$0xff] %v444
  // Predicated region
  $region30: #{relationformer_forward.3} parent=0 // pred_check
    _
  $region31: #{relationformer_forward.3} parent=0 // pred_check_branch
    %452 = sbr.rel (0) target = $region33
  $region32: #{relationformer_forward.3} parent=0 // pred_region
    _
  $region33: #{relationformer_forward.3} parent=0 // pred_fallthru
    _
  // Predicated region
  $region34: #{relationformer_forward.3} parent=0 // pred_check
    _
  $region35: #{relationformer_forward.3} parent=0 // pred_check_branch
    %454 = sbr.rel (0) target = $region37
  $region36: #{relationformer_forward.3} parent=0 // pred_region
    _
  $region37: #{relationformer_forward.3} parent=0 // pred_fallthru
    _

</llo_original>
